<compile_context>
chip_gen: v6e
topology: v6e:2x2x1
jax: 0.10.0
libtpu: 0.0.40
codegen_flags: <defaults>
</compile_context>

<pallas_src>
import jax
import jax.numpy as jnp
from jax.experimental import pallas as pl
from jax.experimental.pallas import tpu as pltpu


def _round_up(a: int, b: int) -> int:
    return ((a + b - 1) // b) * b


def _cdiv(a: int, b: int) -> int:
    return (a + b - 1) // b


def linear_kernel(xp_ref, w_ref, b_ref, o_ref):
    # xp_ref: (tb, lane)   packed input tile (pack batch rows per lane row), VMEM
    # w_ref:  (lane, pack) block-diagonal weight, resident across the grid, VMEM
    # b_ref:  (1, 1)       bias scalar, SMEM
    # o_ref:  (tb, pack)   per-tile outputs (pack batch outputs per row)
    y = jnp.dot(xp_ref[...], w_ref[...], preferred_element_type=jnp.float32)
    o_ref[...] = y + b_ref[0, 0]


def _tile_rows(rows: int, lane: int, itemsize: int) -> int:
    """Packed rows per grid step, derived from a VMEM byte budget."""
    budget = 12 * 1024 * 1024                      # x tile + lane-padded out tile, x2 buffers
    per_row = 2 * (lane * itemsize + 128 * 4)
    tb = max(8, (budget // per_row) // 8 * 8)
    # Prefer >= 4 grid steps (2 per TensorCore on v7x) once tiles would still be
    # >= ~512 packed rows (~256 KiB); harmless on single-core v5e/v6e.
    if rows >= 4 * 512:
        tb = min(tb, _round_up(_cdiv(rows, 4), 8))
    if tb >= rows:
        return rows                                 # single block == full array
    return tb                                       # multiple of 8; last block masked


def linear_forward(x, weight, bias):
    """y = x @ weight.T + bias  (same math as torch.nn.Linear(num_feature, 1)).

    x:      (B, F)
    weight: (1, F)  (PyTorch layout: (out_features, in_features))
    bias:   (1,)
    returns (B, 1) in x.dtype
    """
    B, F = x.shape
    dtype = x.dtype
    itemsize = jnp.dtype(dtype).itemsize

    # ---- lane-dense packing parameters ----
    if F <= 128:
        f_pad = 1 << max(0, (F - 1).bit_length())   # next power of two >= F (divides 128)
    else:
        f_pad = _round_up(F, 128)
    pack = max(1, 128 // f_pad)                     # batch rows packed per lane row
    lane = pack * f_pad                             # kernel's last-dim width

    if F == f_pad and B % pack == 0:
        # Fast path: free row-major reshape, zero extra HBM traffic.
        rows = B // pack
        xp = x.reshape(rows, lane)
    else:
        # Ragged/odd shapes only: pad batch to a multiple of `pack` (and features to
        # f_pad).  This is the only path that materializes a copy of x.
        b_pad = _round_up(B, pack)
        xp = jnp.pad(x, ((0, b_pad - B), (0, f_pad - F))).reshape(b_pad // pack, lane)
        rows = b_pad // pack

    # Block-diagonal weight: column j holds w in rows j*f_pad : (j+1)*f_pad.
    w = weight.reshape(-1).astype(dtype)                              # (F,)
    w_pad = jnp.zeros((f_pad,), dtype).at[:F].set(w) if F != f_pad else w
    w_block = jnp.kron(jnp.eye(pack, dtype=dtype), w_pad[:, None])    # (lane, pack)

    b_scalar = jnp.asarray(bias, jnp.float32).reshape(1, 1)           # SMEM scalar

    tb = _tile_rows(rows, lane, itemsize)
    grid = (_cdiv(rows, tb),)

    bytes_accessed = rows * lane * itemsize + lane * pack * itemsize + rows * pack * 4

    yp = pl.pallas_call(
        linear_kernel,
        out_shape=jax.ShapeDtypeStruct((rows, pack), jnp.float32),
        grid=grid,
        in_specs=[
            pl.BlockSpec((tb, lane), lambda i: (i, 0)),            # x tile, pipelined
            pl.BlockSpec((lane, pack), lambda i: (0, 0)),          # weight, resident
            pl.BlockSpec(memory_space=pltpu.MemorySpace.SMEM),     # bias scalar
        ],
        out_specs=pl.BlockSpec((tb, pack), lambda i: (i, 0)),
        compiler_params=pltpu.CompilerParams(
            dimension_semantics=("parallel",),
            vmem_limit_bytes=32 * 1024 * 1024,
        ),
        cost_estimate=pl.CostEstimate(
            flops=2 * B * F, transcendentals=0, bytes_accessed=bytes_accessed),
    )(xp, w_block, b_scalar)

    # (rows, pack) -> (rows*pack, 1); drop pad rows (no-op slice on the fast path).
    return yp.reshape(rows * pack, 1)[:B].astype(dtype)


if __name__ == "__main__":
    key = jax.random.PRNGKey(0)
    kx, kw, kb = jax.random.split(key, 3)

    num_feature = 32
    # Deterministic synthetic parameters (shapes match nn.Linear(num_feature, 1)).
    weight = jax.random.normal(kw, (1, num_feature), dtype=jnp.float32) * 0.1  # (out, in)
    bias = jax.random.normal(kb, (1,), dtype=jnp.float32) * 0.1                # (out,)

    # batch=500: zero-copy fast path (B % pack == 0).
    # batch=10 : ragged path (B % pack != 0 -> small tail pad).
    for batch in (500, 10):
        x = jax.random.normal(kx, (batch, num_feature), dtype=jnp.float32)
        y = jax.block_until_ready(linear_forward(x, weight, bias))

        y_ref = x @ weight.T + bias
        assert y.shape == (batch, 1)
        assert jnp.allclose(y, y_ref, atol=1e-5, rtol=1e-5), float(
            jnp.max(jnp.abs(y - y_ref)))

    print("KERNEL_OK")
</pallas_src>

<mosaic_0001>
module attributes {stable_mosaic.version = 11 : i64} {
  func.func @linear_kernel(%arg0: i32, %arg1: memref<125x128xf32, #tpu.memory_space<vmem>>, %arg2: memref<128x4xf32, #tpu.memory_space<vmem>>, %arg3: memref<1x1xf32, #tpu.memory_space<smem>>, %arg4: memref<125x4xf32, #tpu.memory_space<vmem>>) attributes {dimension_semantics = [#tpu.dimension_semantics<parallel>], iteration_bounds = array<i64: 1>, scalar_prefetch = 0 : i64, scratch_operands = 0 : i64, tpu.core_type = #tpu.core_type<tc>, window_params = [{transform_indices = @transform_0, window_bounds = array<i64: 125, 128>}, {pipeline_mode = #tpu.pipeline_mode<synchronous>, transform_indices = @transform_1, window_bounds = array<i64: 128, 4>}, {transform_indices = @transform_2, window_bounds = array<i64: 1, 1>}, {transform_indices = @transform_3, window_bounds = array<i64: 125, 4>}]} {
    %c0 = arith.constant 0 : index
    %c0_0 = arith.constant 0 : index
    %0 = vector.load %arg1[%c0, %c0_0] : memref<125x128xf32, #tpu.memory_space<vmem>>, vector<125x128xf32>
    %c0_1 = arith.constant 0 : index
    %c0_2 = arith.constant 0 : index
    %1 = vector.load %arg2[%c0_1, %c0_2] : memref<128x4xf32, #tpu.memory_space<vmem>>, vector<128x4xf32>
    %cst = arith.constant dense<0.000000e+00> : vector<125x4xf32>
    %2 = tpu.matmul %0, %1, %cst {dimension_numbers = #tpu.dot_dimension_numbers<[1], [0], [0], [1], [0, 0, 1, 1], [], []>} : vector<125x128xf32>, vector<128x4xf32>, vector<125x4xf32> -> vector<125x4xf32>
    %c0_3 = arith.constant 0 : index
    %c0_4 = arith.constant 0 : index
    %3 = memref.load %arg3[%c0_3, %c0_4] : memref<1x1xf32, #tpu.memory_space<smem>>
    %4 = vector.broadcast %3 : f32 to vector<125x4xf32>
    %5 = arith.addf %2, %4 : vector<125x4xf32>
    %c0_5 = arith.constant 0 : index
    %c0_6 = arith.constant 0 : index
    %6 = vector.load %arg4[%c0_5, %c0_6] : memref<125x4xf32, #tpu.memory_space<vmem>>, vector<125x4xf32>
    tpu.vector_store %arg4[%c0_5, %c0_6], %5 {strides = array<i32>} : memref<125x4xf32, #tpu.memory_space<vmem>>, vector<125x4xf32>,
    return
  }
  func.func @transform_0(%arg0: i32) -> (i32, i32) {
    %c0_i32 = arith.constant 0 : i32
    %c0_i32_0 = arith.constant 0 : i32
    return %arg0, %c0_i32 : i32, i32
  }
  func.func @transform_1(%arg0: i32) -> (i32, i32) {
    %c0_i32 = arith.constant 0 : i32
    %c0_i32_0 = arith.constant 0 : i32
    %c0_i32_1 = arith.constant 0 : i32
    return %c0_i32, %c0_i32_0 : i32, i32
  }
  func.func @transform_2(%arg0: i32) -> (i32, i32) {
    %c0_i32 = arith.constant 0 : i32
    %c0_i32_0 = arith.constant 0 : i32
    %c0_i32_1 = arith.constant 0 : i32
    return %c0_i32, %c0_i32_0 : i32, i32
  }
  func.func @transform_3(%arg0: i32) -> (i32, i32) {
    %c0_i32 = arith.constant 0 : i32
    %c0_i32_0 = arith.constant 0 : i32
    return %arg0, %c0_i32 : i32, i32
  }
}

</mosaic_0001>

<llo_original>
// kernel: tpu_custom_call.1
$region0: #{tpu_custom_call.1}
  #allocation0 [shape = 'u32[]', space=smem, size = 0x4, offset = 0x4, fixed_abs, tag = 'smem constant byte address 0x4 - core index']
  #allocation1 [shape = 'u32[144,128]{1,0:T(1,128)}', space=vmem, size = 0x12000, scoped, tag = 'internal scratch']
  #allocation2 [shape = 'f32[1,1]{1,0:T(1,128)S(6)}', space=smem, size = 0x200, scoped, tag = 'scoped memory for tpu_custom_call.1']
  %s0 = inlined_call_operand.vmem [shape: f32[125,128], index: 0, kind: input, shape index: {}]
  %s1 = inlined_call_operand.vmem [shape: f32[128,4], index: 1, kind: input, shape index: {}]
  %s2 = inlined_call_operand.<no memory space> [shape: f32[1,1], index: 2, kind: input, shape index: {}]
  %s3 = inlined_call_operand.vmem [shape: f32[125,4], index: 3, kind: output, shape index: {}]
  %s4 = sld [smem:[#allocation0]]
  $region22: #{tpu_custom_call.1} parent=0
    _
  %s6 = ssub.s32 1, %s4
  %s7 = scalar_select 0, %s6, %s4
  %8 = sst [smem:[#allocation2]] %s2
  // Predicated region
  $region2: #{tpu_custom_call.1} parent=0 // pred_check
    _
  $region3: #{tpu_custom_call.1} parent=0 // pred_check_branch
    %10 = sbr.rel (0) target = $region5
  $region4: #{tpu_custom_call.1} parent=0 // pred_region
    _
  $region5: #{tpu_custom_call.1} parent=0 // pred_fallthru
    _
  // Predicated region
  $region6: #{tpu_custom_call.1} parent=0 // pred_check
    _
  $region7: #{tpu_custom_call.1} parent=0 // pred_check_branch
    %12 = sbr.rel (0) target = $region9
  $region8: #{tpu_custom_call.1} parent=0 // pred_region
    _
  $region9: #{tpu_custom_call.1} parent=0 // pred_fallthru
    _
  // Predicated region
  $region10: #{tpu_custom_call.1} parent=0 // pred_check
    _
  $region11: #{tpu_custom_call.1} parent=0 // pred_check_branch
    %14 = sbr.rel (0) target = $region13
  $region12: #{tpu_custom_call.1} parent=0 // pred_region
    _
  $region13: #{tpu_custom_call.1} parent=0 // pred_fallthru
    _
  %v15 = vld [vmem:[%s0] sm:$0xff]
  %v16 = vld [vmem:[%s0 + $0x8] sm:$0xff]
  %v17 = vld [vmem:[%s0 + $0x10] sm:$0xff]
  %v18 = vld [vmem:[%s0 + $0x18] sm:$0xff]
  %v19 = vld [vmem:[%s0 + $0x20] sm:$0xff]
  %v20 = vld [vmem:[%s0 + $0x28] sm:$0xff]
  %v21 = vld [vmem:[%s0 + $0x30] sm:$0xff]
  %v22 = vld [vmem:[%s0 + $0x38] sm:$0xff]
  %v23 = vld [vmem:[%s0 + $0x40] sm:$0xff]
  %v24 = vld [vmem:[%s0 + $0x48] sm:$0xff]
  %v25 = vld [vmem:[%s0 + $0x50] sm:$0xff]
  %v26 = vld [vmem:[%s0 + $0x58] sm:$0xff]
  %v27 = vld [vmem:[%s0 + $0x60] sm:$0xff]
  %v28 = vld [vmem:[%s0 + $0x68] sm:$0xff]
  %v29 = vld [vmem:[%s0 + $0x70] sm:$0xff]
  %v30 = vld [vmem:[%s0 + $0x78] sm:$0x1f]
  %v31 = vld [vmem:[%s1] sm:$0xff]
  %v32 = vld [vmem:[%s1 + $0x8] sm:$0xff]
  %v33 = vld [vmem:[%s1 + $0x10] sm:$0xff]
  %v34 = vld [vmem:[%s1 + $0x18] sm:$0xff]
  %v35 = vld [vmem:[%s1 + $0x20] sm:$0xff]
  %v36 = vld [vmem:[%s1 + $0x28] sm:$0xff]
  %v37 = vld [vmem:[%s1 + $0x30] sm:$0xff]
  %v38 = vld [vmem:[%s1 + $0x38] sm:$0xff]
  %v39 = vld [vmem:[%s1 + $0x40] sm:$0xff]
  %v40 = vld [vmem:[%s1 + $0x48] sm:$0xff]
  %v41 = vld [vmem:[%s1 + $0x50] sm:$0xff]
  %v42 = vld [vmem:[%s1 + $0x58] sm:$0xff]
  %v43 = vld [vmem:[%s1 + $0x60] sm:$0xff]
  %v44 = vld [vmem:[%s1 + $0x68] sm:$0xff]
  %v45 = vld [vmem:[%s1 + $0x70] sm:$0xff]
  %v46 = vld [vmem:[%s1 + $0x78] sm:$0xff]
  %s47 = sld [smem:[#allocation2]]
  %v48 = vstv %s47
  %49 = vmatprep.subr.mxu0 0.0
  %50 = vmatpush1.msra.mxu0 %v46
  %51 = vmatprep.subr.mxu0 0.0
  %52 = vmatpush1.msra.mxu0 %v45
  %53 = vmatprep.subr.mxu0 0.0
  %54 = vmatpush1.msra.mxu0 %v44
  %55 = vmatprep.subr.mxu0 0.0
  %56 = vmatpush1.msra.mxu0 %v43
  %57 = vmatprep.subr.mxu0 0.0
  %58 = vmatpush1.msra.mxu0 %v42
  %59 = vmatprep.subr.mxu0 0.0
  %60 = vmatpush1.msra.mxu0 %v41
  %61 = vmatprep.subr.mxu0 0.0
  %62 = vmatpush1.msra.mxu0 %v40
  %63 = vmatprep.subr.mxu0 0.0
  %64 = vmatpush1.msra.mxu0 %v39
  %65 = vmatprep.subr.mxu0 0.0
  %66 = vmatpush1.msra.mxu0 %v38
  %67 = vmatprep.subr.mxu0 0.0
  %68 = vmatpush1.msra.mxu0 %v37
  %69 = vmatprep.subr.mxu0 0.0
  %70 = vmatpush1.msra.mxu0 %v36
  %71 = vmatprep.subr.mxu0 0.0
  %72 = vmatpush1.msra.mxu0 %v35
  %73 = vmatprep.subr.mxu0 0.0
  %74 = vmatpush1.msra.mxu0 %v34
  %75 = vmatprep.subr.mxu0 0.0
  %76 = vmatpush1.msra.mxu0 %v33
  %77 = vmatprep.subr.mxu0 0.0
  %78 = vmatpush1.msra.mxu0 %v32
  %79 = vmatprep.subr.mxu0 0.0
  %80 = vmatpush1.msra.mxu0 %v31
  %81 = vmatprep.subr.mxu0 0.0
  %82 = vmatpush2.msra.mxu0 0.0
  %83 = vmatprep.subr.mxu0 0.0
  %84 = vmatpush2.msra.mxu0 0.0
  %85 = vmatprep.subr.mxu0 0.0
  %86 = vmatpush2.msra.mxu0 0.0
  %87 = vmatprep.subr.mxu0 0.0
  %88 = vmatpush2.msra.mxu0 0.0
  %89 = vmatprep.subr.mxu0 0.0
  %90 = vmatpush2.msra.mxu0 0.0
  %91 = vmatprep.subr.mxu0 0.0
  %92 = vmatpush2.msra.mxu0 0.0
  %93 = vmatprep.subr.mxu0 0.0
  %94 = vmatpush2.msra.mxu0 0.0
  %95 = vmatprep.subr.mxu0 0.0
  %96 = vmatpush2.msra.mxu0 0.0
  %97 = vmatprep.subr.mxu0 0.0
  %98 = vmatpush2.msra.mxu0 0.0
  %99 = vmatprep.subr.mxu0 0.0
  %100 = vmatpush2.msra.mxu0 0.0
  %101 = vmatprep.subr.mxu0 0.0
  %102 = vmatpush2.msra.mxu0 0.0
  %103 = vmatprep.subr.mxu0 0.0
  %104 = vmatpush2.msra.mxu0 0.0
  %105 = vmatprep.subr.mxu0 0.0
  %106 = vmatpush2.msra.mxu0 0.0
  %107 = vmatprep.subr.mxu0 0.0
  %108 = vmatpush2.msra.mxu0 0.0
  %109 = vmatprep.subr.mxu0 0.0
  %110 = vmatpush2.msra.mxu0 0.0
  %111 = vmatprep.subr.mxu0 0.0
  %112 = vmatpush2.msra.mxu0 0.0
  %113 = vmatprep.mubr.f32.mxu0 0.0
  %114 = vmatmul.mubr.f32.gmra.mxu0 %v15
  %v115 = vpop.f32.mrf.mxu0
  %v116 = vadd.f32 %v48, %v115
  %v117 = vpop.f32.mrf.mxu0
  %118 = vmatprep.mubr.f32.mxu0 0.0
  %119 = vmatmul.mubr.f32.gmra.mxu0 %v16
  %v120 = vpop.f32.mrf.mxu0
  %v121 = vadd.f32 %v48, %v120
  %v122 = vpop.f32.mrf.mxu0
  %123 = vmatprep.mubr.f32.mxu0 0.0
  %124 = vmatmul.mubr.f32.gmra.mxu0 %v17
  %v125 = vpop.f32.mrf.mxu0
  %v126 = vadd.f32 %v48, %v125
  %v127 = vpop.f32.mrf.mxu0
  %128 = vmatprep.mubr.f32.mxu0 0.0
  %129 = vmatmul.mubr.f32.gmra.mxu0 %v18
  %v130 = vpop.f32.mrf.mxu0
  %v131 = vadd.f32 %v48, %v130
  %v132 = vpop.f32.mrf.mxu0
  %133 = vmatprep.mubr.f32.mxu0 0.0
  %134 = vmatmul.mubr.f32.gmra.mxu0 %v19
  %v135 = vpop.f32.mrf.mxu0
  %v136 = vadd.f32 %v48, %v135
  %v137 = vpop.f32.mrf.mxu0
  %138 = vmatprep.mubr.f32.mxu0 0.0
  %139 = vmatmul.mubr.f32.gmra.mxu0 %v20
  %v140 = vpop.f32.mrf.mxu0
  %v141 = vadd.f32 %v48, %v140
  %v142 = vpop.f32.mrf.mxu0
  %143 = vmatprep.mubr.f32.mxu0 0.0
  %144 = vmatmul.mubr.f32.gmra.mxu0 %v21
  %v145 = vpop.f32.mrf.mxu0
  %v146 = vadd.f32 %v48, %v145
  %v147 = vpop.f32.mrf.mxu0
  %148 = vmatprep.mubr.f32.mxu0 0.0
  %149 = vmatmul.mubr.f32.gmra.mxu0 %v22
  %v150 = vpop.f32.mrf.mxu0
  %v151 = vadd.f32 %v48, %v150
  %v152 = vpop.f32.mrf.mxu0
  %153 = vmatprep.mubr.f32.mxu0 0.0
  %154 = vmatmul.mubr.f32.gmra.mxu0 %v23
  %v155 = vpop.f32.mrf.mxu0
  %v156 = vadd.f32 %v48, %v155
  %v157 = vpop.f32.mrf.mxu0
  %158 = vmatprep.mubr.f32.mxu0 0.0
  %159 = vmatmul.mubr.f32.gmra.mxu0 %v24
  %v160 = vpop.f32.mrf.mxu0
  %v161 = vadd.f32 %v48, %v160
  %v162 = vpop.f32.mrf.mxu0
  %163 = vmatprep.mubr.f32.mxu0 0.0
  %164 = vmatmul.mubr.f32.gmra.mxu0 %v25
  %v165 = vpop.f32.mrf.mxu0
  %v166 = vadd.f32 %v48, %v165
  %v167 = vpop.f32.mrf.mxu0
  %168 = vmatprep.mubr.f32.mxu0 0.0
  %169 = vmatmul.mubr.f32.gmra.mxu0 %v26
  %v170 = vpop.f32.mrf.mxu0
  %v171 = vadd.f32 %v48, %v170
  %v172 = vpop.f32.mrf.mxu0
  %173 = vmatprep.mubr.f32.mxu0 0.0
  %174 = vmatmul.mubr.f32.gmra.mxu0 %v27
  %v175 = vpop.f32.mrf.mxu0
  %v176 = vadd.f32 %v48, %v175
  %v177 = vpop.f32.mrf.mxu0
  %178 = vmatprep.mubr.f32.mxu0 0.0
  %179 = vmatmul.mubr.f32.gmra.mxu0 %v28
  %v180 = vpop.f32.mrf.mxu0
  %v181 = vadd.f32 %v48, %v180
  %v182 = vpop.f32.mrf.mxu0
  %183 = vmatprep.mubr.f32.mxu0 0.0
  %184 = vmatmul.mubr.f32.gmra.mxu0 %v29
  %v185 = vpop.f32.mrf.mxu0
  %v186 = vadd.f32 %v48, %v185
  %v187 = vpop.f32.mrf.mxu0
  %188 = vmatprep.mubr.f32.mxu0 0.0
  %189 = vmatmul.mubr.f32.gmra.mxu0 %v30
  %v190 = vpop.f32.mrf.mxu0
  %v191 = vadd.f32 %v48, %v190
  %v192 = vpop.f32.mrf.mxu0
  %193 = vdwg.mxu0
  %vm194 = vcmask 31744
  %195 = vst.msk [vmem:[%s3] sm:$0xff] %vm194, %v116
  %196 = vst.msk [vmem:[%s3 + $0x8] sm:$0xff] %vm194, %v121
  %197 = vst.msk [vmem:[%s3 + $0x10] sm:$0xff] %vm194, %v126
  %198 = vst.msk [vmem:[%s3 + $0x18] sm:$0xff] %vm194, %v131
  %199 = vst.msk [vmem:[%s3 + $0x20] sm:$0xff] %vm194, %v136
  %200 = vst.msk [vmem:[%s3 + $0x28] sm:$0xff] %vm194, %v141
  %201 = vst.msk [vmem:[%s3 + $0x30] sm:$0xff] %vm194, %v146
  %202 = vst.msk [vmem:[%s3 + $0x38] sm:$0xff] %vm194, %v151
  %203 = vst.msk [vmem:[%s3 + $0x40] sm:$0xff] %vm194, %v156
  %204 = vst.msk [vmem:[%s3 + $0x48] sm:$0xff] %vm194, %v161
  %205 = vst.msk [vmem:[%s3 + $0x50] sm:$0xff] %vm194, %v166
  %206 = vst.msk [vmem:[%s3 + $0x58] sm:$0xff] %vm194, %v171
  %207 = vst.msk [vmem:[%s3 + $0x60] sm:$0xff] %vm194, %v176
  %208 = vst.msk [vmem:[%s3 + $0x68] sm:$0xff] %vm194, %v181
  %209 = vst.msk [vmem:[%s3 + $0x70] sm:$0xff] %vm194, %v186
  %vm210 = vcmask 28672
  %211 = vst.msk [vmem:[%s3 + $0x78] sm:$0x1f] %vm210, %v191
  // Predicated region
  $region14: #{tpu_custom_call.1} parent=0 // pred_check
    _
  $region15: #{tpu_custom_call.1} parent=0 // pred_check_branch
    %213 = sbr.rel (0) target = $region17
  $region16: #{tpu_custom_call.1} parent=0 // pred_region
    _
  $region17: #{tpu_custom_call.1} parent=0 // pred_fallthru
    _
  // Predicated region
  $region18: #{tpu_custom_call.1} parent=0 // pred_check
    _
  $region19: #{tpu_custom_call.1} parent=0 // pred_check_branch
    %215 = sbr.rel (0) target = $region21
  $region20: #{tpu_custom_call.1} parent=0 // pred_region
    _
  $region21: #{tpu_custom_call.1} parent=0 // pred_fallthru
    _

</llo_original>
